<compile_context>
chip_gen: v6e
topology: v6e:2x2x1
jax: 0.10.0
libtpu: 0.0.40
codegen_flags: <defaults>
</compile_context>

<pallas_src>
import functools
import math

import jax
import jax.numpy as jnp
from jax import lax
from jax.experimental import pallas as pl
from jax.experimental.pallas import tpu as pltpu


def _round_up(x, m):
    return ((x + m - 1) // m) * m


def _pick_batch_block(B, S, target_rows=256):
    """Batches per grid step: 8-aligned row blocks, ~target_rows MXU rows, >=2 grid steps."""
    # TODO(synk): for awkward B/S combos, pad whole batches instead of falling back to bb=B.
    candidates = [bb for bb in range(1, B + 1)
                  if B % bb == 0 and ((bb * S) % 8 == 0 or bb == B)]

    def score(bb):
        rows = bb * S
        return (B // bb >= 2,            # >=2 grid steps: v7x megacore + pipelining
                rows <= target_rows,     # stay inside the per-step VMEM/tile budget
                rows)                    # then: as many MXU rows as possible
    return max(candidates, key=score)


def _adaptive_span_kernel(x_ref, w_ref, o_ref, qkv_ref, *,
                          n_batch, seq_len, cqk, cv):
    # x_ref:   (Bb*S, D)          f32   (cast to bf16 in-register)
    # w_ref:   (D, 2*Cqk + Cv)    bf16  fused [Wq*scale | Wk | Wv[:, :span]]
    # o_ref:   (Bb*S, Cv)         bf16  lane-dense output
    # qkv_ref: (Bb*S, 2*Cqk + Cv) bf16  VMEM scratch staging the fused projection
    xm = x_ref[...].astype(jnp.bfloat16)
    w = w_ref[...]

    # Fused QKV projection: one MXU matmul, f32 accumulation, staged in VMEM.
    qkv_ref[...] = jnp.dot(
        xm, w, preferred_element_type=jnp.float32).astype(qkv_ref.dtype)

    def body(b, carry):
        lo = b * seq_len                                   # constant once unrolled
        qb = qkv_ref[pl.ds(lo, seq_len), :cqk]             # (S, Cqk) bf16
        kb = qkv_ref[pl.ds(lo, seq_len), cqk:2 * cqk]      # (S, Cqk) bf16
        vb = qkv_ref[pl.ds(lo, seq_len), 2 * cqk:]         # (S, Cv)  bf16

        # scores: contract the last dims directly (no k.T relayout), f32 accumulate.
        s = lax.dot_general(qb, kb, (((1,), (1,)), ((), ())),
                            preferred_element_type=jnp.float32)   # (S, S) f32

        # numerically stable softmax over keys, in f32; EUP reciprocal off the VALU path.
        s = s - jnp.max(s, axis=-1, keepdims=True)
        p = jnp.exp(s)
        p = p * pl.reciprocal(jnp.sum(p, axis=-1, keepdims=True), approx=True)

        ob = jnp.dot(p.astype(jnp.bfloat16), vb,
                     preferred_element_type=jnp.float32)          # (S, Cv) f32
        o_ref[pl.ds(lo, seq_len), :] = ob.astype(o_ref.dtype)     # lane-dense bf16 store
        return carry

    lax.fori_loop(0, n_batch, body, None, unroll=True)
    # TODO(synk): for long S, tile over keys with an online-softmax (flash-style)
    #             accumulator instead of materializing the full (S, S) scores.


def adaptive_span_forward(x, wq, wk, wv, *, adaptive_span, max_span):
    """Pallas implementation of AdaptiveSpan.forward.

    x: (B, S, D) float32;  wq, wk, wv: (D, D) float32.
    Returns (B, S, span) with span = int(adaptive_span * max_span), clamped to D
    (matching Python slice semantics).
    """
    B, S, D = x.shape
    span = int(adaptive_span * max_span)     # host-side int (mirrors .item())
    span = min(span, D)
    assert span > 0, "span must be positive"

    cqk = _round_up(D, 128)                  # Q/K section width
    cv = _round_up(span, 128)                # V section + output width (<= cqk)
    total_c = 2 * cqk + cv
    scale = 1.0 / math.sqrt(D)

    def _pad_cols(w, ncols, width):
        out = jnp.zeros((D, width), dtype=jnp.float32)
        return out.at[:, :ncols].set(w[:, :ncols].astype(jnp.float32))

    # Fused [Wq*scale | Wk | Wv[:, :span]]; the V section is only `span` columns
    # wide (padded to Cv), so the kernel never computes features that get sliced off.
    w_fused = jnp.concatenate(
        [_pad_cols(wq * scale, D, cqk),
         _pad_cols(wk, D, cqk),
         _pad_cols(wv, span, cv)],
        axis=1).astype(jnp.bfloat16)         # (D, 2*Cqk + Cv)

    bb = _pick_batch_block(B, S)
    rows = bb * S
    x2d = x.reshape(B * S, D)                # no wrapper-side dtype cast

    # VMEM budget: 2x x-block + 2x out-block + 2x weight + qkv scratch + score slack.
    est = (2 * rows * D * x.dtype.itemsize + 2 * D * total_c * 2
           + 2 * rows * cv * 2 + rows * total_c * 2 + 3 * S * S * 4 + (2 << 20))
    vmem_limit = int(min(max(est, 16 << 20), 64 << 20))

    kernel = functools.partial(_adaptive_span_kernel,
                               n_batch=bb, seq_len=S, cqk=cqk, cv=cv)

    out = pl.pallas_call(
        kernel,
        out_shape=jax.ShapeDtypeStruct((B * S, cv), jnp.bfloat16),
        grid_spec=pltpu.PrefetchScalarGridSpec(
            num_scalar_prefetch=0,
            grid=(B // bb,),
            in_specs=[
                pl.BlockSpec((rows, D), lambda i: (i, 0)),       # x rows per step
                pl.BlockSpec((D, total_c), lambda i: (0, 0)),    # fused weight (constant)
            ],
            out_specs=pl.BlockSpec((rows, cv), lambda i: (i, 0)),  # lane-dense (Cv % 128 == 0)
            scratch_shapes=[pltpu.VMEM((rows, total_c), jnp.bfloat16)],
        ),
        compiler_params=pltpu.CompilerParams(
            dimension_semantics=("parallel",),
            vmem_limit_bytes=vmem_limit),
    )(x2d, w_fused)

    # Exact span slice (+ cast back to the module's dtype) outside the kernel.
    # TODO(synk): if the consumer accepts the padded (B, S, Cv) bf16 layout, skip this pass.
    return out.reshape(B, S, cv)[:, :, :span].astype(x.dtype)


def reference_forward(x, wq, wk, wv, *, adaptive_span, max_span):
    """Plain-JAX f32 reference mirroring the PyTorch semantics."""
    D = x.shape[-1]
    q = x @ wq
    k = x @ wk
    v = x @ wv
    s = jnp.einsum("bqd,bkd->bqk", q, k) / math.sqrt(D)
    p = jax.nn.softmax(s, axis=-1)
    attn_out = jnp.einsum("bqk,bkd->bqd", p, v)
    span = min(int(adaptive_span * max_span), D)
    return attn_out[:, :, :span]


def _run_case(key, B, S, D, max_span, init_val):
    kx, kq, kk, kv = jax.random.split(key, 4)
    x = jax.random.normal(kx, (B, S, D), dtype=jnp.float32)
    wq = jax.random.normal(kq, (D, D), dtype=jnp.float32) * (1.0 / math.sqrt(D))
    wk = jax.random.normal(kk, (D, D), dtype=jnp.float32) * (1.0 / math.sqrt(D))
    wv = jax.random.normal(kv, (D, D), dtype=jnp.float32) * (1.0 / math.sqrt(D))

    out = adaptive_span_forward(x, wq, wk, wv,
                                adaptive_span=init_val, max_span=max_span)
    out = jax.block_until_ready(out)
    ref = reference_forward(x, wq, wk, wv,
                            adaptive_span=init_val, max_span=max_span)

    span = min(int(init_val * max_span), D)
    assert out.shape == (B, S, span), out.shape
    # bf16 MXU operands / bf16 output (f32 accumulation) => looser tolerance vs f32 ref.
    assert jnp.allclose(out, ref, atol=5e-2, rtol=5e-2), (
        "mismatch vs reference, max abs diff = "
        f"{float(jnp.max(jnp.abs(out - ref)))}")


if __name__ == "__main__":
    key = jax.random.PRNGKey(0)
    k0, k1 = jax.random.split(key)

    # Small shapes consistent with the module's forward (span = int(0.5*32) = 16).
    _run_case(k0, B=2, S=8, D=32, max_span=32, init_val=0.5)
    # Second small case exercising the dual-width path (Cqk=256 > Cv=128).
    _run_case(k1, B=2, S=8, D=256, max_span=256, init_val=0.5)

    print("KERNEL_OK")
</pallas_src>

<mosaic_0001>
module attributes {stable_mosaic.version = 11 : i64} {
  func.func @_adaptive_span_kernel(%arg0: i32, %arg1: memref<8x32xf32, #tpu.memory_space<vmem>>, %arg2: memref<32x384xbf16, #tpu.memory_space<vmem>>, %arg3: memref<8x128xbf16, #tpu.memory_space<vmem>>, %arg4: memref<8x384xbf16, #tpu.memory_space<vmem>>) attributes {dimension_semantics = [#tpu.dimension_semantics<parallel>], iteration_bounds = array<i64: 2>, scalar_prefetch = 0 : i64, scratch_operands = 1 : i64, tpu.core_type = #tpu.core_type<tc>, window_params = [{transform_indices = @transform_0, window_bounds = array<i64: 8, 32>}, {pipeline_mode = #tpu.pipeline_mode<synchronous>, transform_indices = @transform_1, window_bounds = array<i64: 32, 384>}, {transform_indices = @transform_2, window_bounds = array<i64: 8, 128>}]} {
    %c0 = arith.constant 0 : index
    %c0_0 = arith.constant 0 : index
    %0 = vector.load %arg1[%c0, %c0_0] : memref<8x32xf32, #tpu.memory_space<vmem>>, vector<8x32xf32>
    %1 = arith.truncf %0 : vector<8x32xf32> to vector<8x32xbf16>
    %c0_1 = arith.constant 0 : index
    %c0_2 = arith.constant 0 : index
    %2 = vector.load %arg2[%c0_1, %c0_2] : memref<32x384xbf16, #tpu.memory_space<vmem>>, vector<32x384xbf16>
    %cst = arith.constant dense<0.000000e+00> : vector<8x384xf32>
    %3 = tpu.matmul %1, %2, %cst {dimension_numbers = #tpu.dot_dimension_numbers<[1], [0], [0], [1], [0, 0, 1, 1], [], []>} : vector<8x32xbf16>, vector<32x384xbf16>, vector<8x384xf32> -> vector<8x384xf32>
    %4 = arith.truncf %3 : vector<8x384xf32> to vector<8x384xbf16>
    %c0_3 = arith.constant 0 : index
    %c0_4 = arith.constant 0 : index
    %5 = vector.load %arg4[%c0_3, %c0_4] : memref<8x384xbf16, #tpu.memory_space<vmem>>, vector<8x384xbf16>
    tpu.vector_store %arg4[%c0_3, %c0_4], %4 {strides = array<i32>} : memref<8x384xbf16, #tpu.memory_space<vmem>>, vector<8x384xbf16>,
    %c0_i32 = arith.constant 0 : i32
    %c8_i32 = arith.constant 8 : i32
    %6 = arith.muli %c0_i32, %c8_i32 : i32
    %7 = arith.index_cast %6 : i32 to index
    %c0_5 = arith.constant 0 : index
    %8 = vector.load %arg4[%7, %c0_5] : memref<8x384xbf16, #tpu.memory_space<vmem>>, vector<8x128xbf16>
    %9 = arith.index_cast %6 : i32 to index
    %c128 = arith.constant 128 : index
    %10 = vector.load %arg4[%9, %c128] : memref<8x384xbf16, #tpu.memory_space<vmem>>, vector<8x128xbf16>
    %11 = arith.index_cast %6 : i32 to index
    %c256 = arith.constant 256 : index
    %12 = vector.load %arg4[%11, %c256] : memref<8x384xbf16, #tpu.memory_space<vmem>>, vector<8x128xbf16>
    %cst_6 = arith.constant dense<0.000000e+00> : vector<8x8xf32>
    %13 = tpu.matmul %8, %10, %cst_6 {dimension_numbers = #tpu.dot_dimension_numbers<[1], [1], [0], [0], [0, 0, 1, 0], [], []>} : vector<8x128xbf16>, vector<8x128xbf16>, vector<8x8xf32> -> vector<8x8xf32>
    %cst_7 = arith.constant dense<0xFF800000> : vector<8xf32>
    %14 = vector.multi_reduction <maximumf>, %13, %cst_7 [1] : vector<8x8xf32> to vector<8xf32>
    %15 = vector.shape_cast %14 : vector<8xf32> to vector<8x1xf32>
    %16 = vector.broadcast %15 : vector<8x1xf32> to vector<8x8xf32>
    %17 = arith.subf %13, %16 : vector<8x8xf32>
    %18 = math.exp %17 : vector<8x8xf32>
    %cst_8 = arith.constant dense<0.000000e+00> : vector<8xf32>
    %19 = vector.multi_reduction <add>, %18, %cst_8 [1] : vector<8x8xf32> to vector<8xf32>
    %20 = vector.shape_cast %19 : vector<8xf32> to vector<8x1xf32>
    %21 = tpu.reciprocal %20 {approx = true} : vector<8x1xf32> -> vector<8x1xf32>
    %22 = vector.broadcast %21 : vector<8x1xf32> to vector<8x8xf32>
    %23 = arith.mulf %18, %22 : vector<8x8xf32>
    %24 = arith.truncf %23 : vector<8x8xf32> to vector<8x8xbf16>
    %cst_9 = arith.constant dense<0.000000e+00> : vector<8x128xf32>
    %25 = tpu.matmul %24, %12, %cst_9 {dimension_numbers = #tpu.dot_dimension_numbers<[1], [0], [0], [1], [0, 0, 1, 1], [], []>} : vector<8x8xbf16>, vector<8x128xbf16>, vector<8x128xf32> -> vector<8x128xf32>
    %26 = arith.truncf %25 : vector<8x128xf32> to vector<8x128xbf16>
    %27 = arith.index_cast %6 : i32 to index
    %c0_10 = arith.constant 0 : index
    %28 = vector.load %arg3[%27, %c0_10] : memref<8x128xbf16, #tpu.memory_space<vmem>>, vector<8x128xbf16>
    tpu.vector_store %arg3[%27, %c0_10], %26 {strides = array<i32>} : memref<8x128xbf16, #tpu.memory_space<vmem>>, vector<8x128xbf16>,
    %c1_i32 = arith.constant 1 : i32
    return
  }
  func.func @transform_0(%arg0: i32) -> (i32, i32) {
    %c0_i32 = arith.constant 0 : i32
    %c0_i32_0 = arith.constant 0 : i32
    return %arg0, %c0_i32 : i32, i32
  }
  func.func @transform_1(%arg0: i32) -> (i32, i32) {
    %c0_i32 = arith.constant 0 : i32
    %c0_i32_0 = arith.constant 0 : i32
    %c0_i32_1 = arith.constant 0 : i32
    return %c0_i32, %c0_i32_0 : i32, i32
  }
  func.func @transform_2(%arg0: i32) -> (i32, i32) {
    %c0_i32 = arith.constant 0 : i32
    %c0_i32_0 = arith.constant 0 : i32
    return %arg0, %c0_i32 : i32, i32
  }
}

</mosaic_0001>

<llo_original>
// kernel: tpu_custom_call.1
$region0: #{tpu_custom_call.1}
  #allocation0 [shape = 'u32[]', space=smem, size = 0x4, offset = 0x4, fixed_abs, tag = 'smem constant byte address 0x4 - core index']
  #allocation1 [shape = 'u32[144,128]{1,0:T(1,128)}', space=vmem, size = 0x12000, scoped, tag = 'internal scratch']
  #allocation2 [shape = 'bf16[8,384]{1,0:T(8,128)(2,1)}', space=vmem, size = 0x1800, scoped, tag = 'scratch operand']
  %s0 = inlined_call_operand.hbm [shape: f32[16,32], index: 0, kind: input, shape index: {}]
  %s1 = inlined_call_operand.hbm [shape: bf16[32,384], index: 1, kind: input, shape index: {}]
  %s2 = inlined_call_operand.hbm [shape: bf16[16,128], index: 2, kind: output, shape index: {}]
  %s3 = sld [smem:[#allocation0]]
  $region49: #{tpu_custom_call.1} parent=0
    _
  %s5 = ssub.s32 1, %s3
  %s6 = scalar_select 0, %s5, %s3
  $region1: #{tpu_custom_call.1} parent=0
    #allocation3 [shape = 'u8[8192]{0}', space=vmem, size = 0x2000, scoped, tag = 'input window, operand 0']
    #allocation4 [shape = 's32[2]{0}', space=sflag, size = 0x8, scoped, tag = 'scoped memory for tpu_custom_call.1']
    #allocation5 [shape = 's32[2]{0}', space=sflag, size = 0x8, scoped, tag = 'scoped memory for tpu_custom_call.1']
    #allocation6 [shape = 'u8[24576]{0}', space=vmem, size = 0x6000, scoped, tag = 'input window, operand 1, single buffered']
    #allocation7 [shape = 's32[1]{0}', space=sflag, size = 0x4, scoped, tag = 'scoped memory for tpu_custom_call.1']
    #allocation8 [shape = 'u8[4096]{0}', space=vmem, size = 0x1000, scoped, tag = 'output window, operand 0']
    %7 = vsyncpa [#allocation4], 0
    %s8 = scalar_lea.sflag [#allocation4], 1
    %9 = vsyncpa %s8, 0
    %10 = vsyncpa [#allocation7], 0
    %11 = vsyncpa [#allocation5], 0
    %s12 = scalar_lea.sflag [#allocation5], 1
    %13 = vsyncpa %s12, 0
    loop: start=0, step=1, limit=4
    $region2: #{tpu_custom_call.1} parent=1 // loop_pre_header
      _
    $region3: #{tpu_custom_call.1} parent=1 // loop_header
      %s15 = sphi 0, %s19
      %p16 = scmp.ge.s32.totalorder %s15, 4
      %s25 = sphi 0, %s27
      %s28 = sphi 0, %s25
      %s29 = sphi 0, %s28
      %s45 = sphi 0, %s29
      %s49 = sphi 0, %s49
      %s51 = sphi 0, %s49
      %s52 = sphi 0, %s51
      %s66 = sphi 0, %s52
      %s72 = sphi 0, %s74
      %s75 = sphi 0, %s72
      %s76 = sphi 0, %s75
      %s92 = sphi 0, %s76
    $region4: #{tpu_custom_call.1} parent=1 // loop_header_branch
      %18 = sbr.rel (%p16) target = $region8
    $region5: #{tpu_custom_call.1} parent=1 // loop_body
      %s20 = ssub.s32 %s15, 1
      %s21 = ssub.s32 %s15, 2
      %s22 = sadd.s32 %s15, 1
      %s23 = ssub.s32 %s15, %s22
      %p24 = scmp.eq.s32.totalorder %s23, 0
      %s26 = sadd.s32 %s25, 1
      %s27 = scalar_select %p24, %s25, %s26
      %p30 = pneg %p24
      %p31 = scmp.eq.s32.totalorder %s15, 1
      %p32 = por %p30, %p31
      %p33 = scmp.ne.s32.totalorder %s25, %s28
      %p34 = scmp.eq.s32.totalorder %s15, 0
      %p35 = por %p33, %p34
      %p36 = scmp.ne.s32.totalorder %s25, %s28
      %p37 = scmp.eq.s32.totalorder %s20, 1
      %p38 = por %p36, %p37
      %p39 = scmp.ne.s32.totalorder %s28, %s29
      %p40 = scmp.eq.s32.totalorder %s20, 0
      %p41 = por %p39, %p40
      %p42 = scmp.ne.s32.totalorder %s28, %s29
      %p43 = scmp.eq.s32.totalorder %s21, 1
      %p44 = por %p42, %p43
      %p46 = scmp.ne.s32.totalorder %s29, %s45
      %p47 = scmp.eq.s32.totalorder %s21, 0
      %p48 = por %p46, %p47
      %s50 = sadd.s32 %s49, 1
      %p53 = scmp.eq.s32.totalorder %s15, 1
      %p54 = scmp.ne.s32.totalorder %s49, %s51
      %p55 = scmp.eq.s32.totalorder %s15, 0
      %p56 = por %p54, %p55
      %p57 = scmp.ne.s32.totalorder %s49, %s51
      %p58 = scmp.eq.s32.totalorder %s20, 1
      %p59 = por %p57, %p58
      %p60 = scmp.ne.s32.totalorder %s51, %s52
      %p61 = scmp.eq.s32.totalorder %s20, 0
      %p62 = por %p60, %p61
      %p63 = scmp.ne.s32.totalorder %s51, %s52
      %p64 = scmp.eq.s32.totalorder %s21, 1
      %p65 = por %p63, %p64
      %p67 = scmp.ne.s32.totalorder %s52, %s66
      %p68 = scmp.eq.s32.totalorder %s21, 0
      %p69 = por %p67, %p68
      %s70 = ssub.s32 %s15, %s22
      %p71 = scmp.eq.s32.totalorder %s70, 0
      %s73 = sadd.s32 %s72, 1
      %s74 = scalar_select %p71, %s72, %s73
      %p77 = pneg %p71
      %p78 = scmp.eq.s32.totalorder %s15, 1
      %p79 = por %p77, %p78
      %p80 = scmp.ne.s32.totalorder %s72, %s75
      %p81 = scmp.eq.s32.totalorder %s15, 0
      %p82 = por %p80, %p81
      %p83 = scmp.ne.s32.totalorder %s72, %s75
      %p84 = scmp.eq.s32.totalorder %s20, 1
      %p85 = por %p83, %p84
      %p86 = scmp.ne.s32.totalorder %s75, %s76
      %p87 = scmp.eq.s32.totalorder %s20, 0
      %p88 = por %p86, %p87
      %p89 = scmp.ne.s32.totalorder %s75, %s76
      %p90 = scmp.eq.s32.totalorder %s21, 1
      %p91 = por %p89, %p90
      %p93 = scmp.ne.s32.totalorder %s76, %s92
      %p94 = scmp.eq.s32.totalorder %s21, 0
      %p95 = por %p93, %p94
      %p96 = scmp.le.s32.totalorder 1, %s15
      %p97 = scmp.lt.s32.totalorder %s15, 3
      %p98 = pnand %p96, %p97
      %p99 = pneg %p98
      // Predicated region
      $region9: #{tpu_custom_call.1} parent=5 // pred_check
        _
      $region10: #{tpu_custom_call.1} parent=5 // pred_check_branch
        %101 = sbr.rel (%p98) target = $region12
      $region11: #{tpu_custom_call.1} parent=5 // pred_region
        %s102 = ssub.s32 %s15, 1
        // Predicated region
        $region13: #{tpu_custom_call.1} parent=11 // pred_check
          %p103 = pneg %p62
        $region14: #{tpu_custom_call.1} parent=11 // pred_check_branch
          %105 = sbr.rel (%p103) target = $region16
        $region15: #{tpu_custom_call.1} parent=11 // pred_region
          %s107 = ssub.s32 768, 768
          %108 = vsyncadd [#allocation7], %s107
          %s109 = sshll.u32 [#allocation6], 4
          %s110 = int_to_ptr.vmem [resolvable:$true] %s109
          %115 = dma.hbm_to_vmem [thread:$0]  %s1, 768, %s110, [#allocation7], 192, 192, 12
        $region16: #{tpu_custom_call.1} parent=11 // pred_fallthru
          _
      $region12: #{tpu_custom_call.1} parent=5 // pred_fallthru
        _
      %p116 = scmp.lt.s32.totalorder %s15, 2
      // Predicated region
      $region17: #{tpu_custom_call.1} parent=5 // pred_check
        %p117 = pneg %p116
      $region18: #{tpu_custom_call.1} parent=5 // pred_check_branch
        %119 = sbr.rel (%p117) target = $region20
      $region19: #{tpu_custom_call.1} parent=5 // pred_region
        // Predicated region
        $region21: #{tpu_custom_call.1} parent=19 // pred_check
          %p120 = pneg %p35
        $region22: #{tpu_custom_call.1} parent=19 // pred_check_branch
          %122 = sbr.rel (%p120) target = $region24
        $region23: #{tpu_custom_call.1} parent=19 // pred_region
          %s123 = sand.u32 %s25, 1
          %s124 = scalar_lea.sflag [#allocation4], %s123
          %s125 = sand.u32 %s25, 1
          %s126 = smul.addr %s125, 8
          %s127 = scalar_lea.vmem [#allocation3], %s126
          %s129 = ssub.s32 128, 128
          %130 = vsyncadd %s124, %s129
          %s131 = smul.addr %s15, 128
          %s132 = scalar_lea.hbm %s0, %s131
          %s134 = sshll.u32 %s127, 4
          %s135 = int_to_ptr.vmem [resolvable:$true] %s134
          %137 = dma.hbm_to_vmem [thread:$0]  %s132, 128, %s135, %s124
        $region24: #{tpu_custom_call.1} parent=19 // pred_fallthru
          _
      $region20: #{tpu_custom_call.1} parent=5 // pred_fallthru
        _
      %p138 = scmp.le.s32.totalorder 1, %s15
      %p139 = scmp.lt.s32.totalorder %s15, 3
      %p140 = pnand %p138, %p139
      %p141 = pneg %p140
      // Predicated region
      $region25: #{tpu_custom_call.1} parent=5 // pred_check
        _
      $region26: #{tpu_custom_call.1} parent=5 // pred_check_branch
        %143 = sbr.rel (%p140) target = $region28
      $region27: #{tpu_custom_call.1} parent=5 // pred_region
        %s144 = ssub.s32 %s15, 1
        %s145 = sand.u32 %s28, 1
        %s146 = scalar_lea.sflag [#allocation4], %s145
        %s147 = sand.u32 %s28, 1
        %s148 = smul.addr %s147, 8
        %s149 = scalar_lea.vmem [#allocation3], %s148
        // Predicated region
        $region29: #{tpu_custom_call.1} parent=27 // pred_check
          %p150 = pneg %p41
        $region30: #{tpu_custom_call.1} parent=27 // pred_check_branch
          %152 = sbr.rel (%p150) target = $region32
        $region31: #{tpu_custom_call.1} parent=27 // pred_region
          %153 = dma.done %s146, 128
        $region32: #{tpu_custom_call.1} parent=27 // pred_fallthru
          _
        // Predicated region
        $region33: #{tpu_custom_call.1} parent=27 // pred_check
          %p154 = pneg %p62
        $region34: #{tpu_custom_call.1} parent=27 // pred_check_branch
          %156 = sbr.rel (%p154) target = $region36
        $region35: #{tpu_custom_call.1} parent=27 // pred_region
          %157 = dma.done [#allocation7], 768
        $region36: #{tpu_custom_call.1} parent=27 // pred_fallthru
          _
        %s158 = sand.u32 %s28, 1
        %s159 = scalar_lea.sflag [#allocation4], %s158
        %s160 = sand.u32 %s28, 1
        %s161 = smul.addr %s160, 8
        %s162 = scalar_lea.vmem [#allocation3], %s161
        %p163 = pneg %p41
        %p164 = pneg %p38
        %p165 = pneg %p62
        %p166 = pneg %p59
        %p167 = pneg %p88
        %p168 = pneg %p85
        %s169 = sand.u32 %s75, 1
        %s170 = scalar_lea.sflag [#allocation5], %s169
        %s171 = sand.u32 %s75, 1
        %s172 = smul.addr %s171, 4
        %s173 = scalar_lea.vmem [#allocation8], %s172
        %v175 = vld [vmem:[%s149] sm:$0xff]
        %v176 = vpack.c.bf16 %v175, %v175
        %v177 = vld [vmem:[#allocation6] sm:$0xff]
        %v178 = vld [vmem:[#allocation6 + $0x8] sm:$0xf]
        %v179 = vld [vmem:[#allocation6 + $0xc] sm:$0xff]
        %v180 = vld [vmem:[#allocation6 + $0x14] sm:$0xf]
        %v181 = vld [vmem:[#allocation6 + $0x18] sm:$0xff]
        %v182 = vld [vmem:[#allocation6 + $0x20] sm:$0xf]
        %v183 = vld [vmem:[#allocation6 + $0x24] sm:$0xff]
        %v184 = vld [vmem:[#allocation6 + $0x2c] sm:$0xf]
        %v193 = vunpack.c.l.b16 %v177
        %v194 = vunpack.c.h.b16 %v177
        %v195 = vunpack.c.l.b16 %v178
        %v196 = vunpack.c.l.b16 %v179
        %v197 = vunpack.c.h.b16 %v179
        %v198 = vunpack.c.l.b16 %v180
        %v199 = vunpack.c.l.b16 %v181
        %v200 = vunpack.c.h.b16 %v181
        %v201 = vunpack.c.l.b16 %v182
        %v202 = vunpack.c.l.b16 %v183
        %v203 = vunpack.c.h.b16 %v183
        %v204 = vunpack.c.l.b16 %v184
        %v205 = vpack.c.b16 %v196, %v193
        %v206 = vpack.c.b16 %v197, %v194
        %v207 = vpack.c.b16 %v198, %v195
        %v208 = vpack.c.b16 %v202, %v199
        %v209 = vpack.c.b16 %v203, %v200
        %v210 = vpack.c.b16 %v204, %v201
        %vm217 = vcmask 261120
        %v219 = vsel %vm217, %v176, 0
        %221 = vmatprep.subr.bf16.mxu0 0
        %222 = vmatpush1.bf16.msra.mxu0 0
        %223 = vmatprep.subr.bf16.mxu0 0
        %224 = vmatpush1.bf16.msra.mxu0 0
        %225 = vmatprep.subr.bf16.mxu0 0
        %226 = vmatpush1.bf16.msra.mxu0 0
        %227 = vmatprep.subr.bf16.mxu0 0
        %228 = vmatpush1.bf16.msra.mxu0 0
        %229 = vmatprep.subr.bf16.mxu0 0
        %230 = vmatpush1.bf16.msra.mxu0 0
        %231 = vmatprep.subr.bf16.mxu0 0
        %232 = vmatpush1.bf16.msra.mxu0 0
        %233 = vmatprep.subr.bf16.mxu0 %v209
        %234 = vmatpush1.bf16.msra.mxu0 %v208
        %235 = vmatprep.subr.bf16.mxu0 %v206
        %236 = vmatpush1.bf16.msra.mxu0 %v205
        %237 = vmatprep.subr.bf16.mxu0 0
        %238 = vmatpush2.bf16.msra.mxu0 0
        %239 = vmatprep.subr.bf16.mxu0 0
        %240 = vmatpush2.bf16.msra.mxu0 0
        %241 = vmatprep.subr.bf16.mxu0 0
        %242 = vmatpush2.bf16.msra.mxu0 0
        %243 = vmatprep.subr.bf16.mxu0 0
        %244 = vmatpush2.bf16.msra.mxu0 0
        %245 = vmatprep.subr.bf16.mxu0 0
        %246 = vmatpush2.bf16.msra.mxu0 0
        %247 = vmatprep.subr.bf16.mxu0 0
        %248 = vmatpush2.bf16.msra.mxu0 0
        %249 = vmatprep.subr.bf16.mxu0 0
        %250 = vmatpush2.bf16.msra.mxu0 0
        %251 = vmatprep.subr.bf16.mxu0 0
        %252 = vmatpush2.bf16.msra.mxu0 0
        %253 = vmatprep.mubr.bf16.mxu0 0
        %254 = vmatmul.mubr.bf16.gmra.mxu0 %v219
        %v255 = vpop.f32.mrf.mxu0
        %v256 = vadd.f32 0.0, %v255
        %v257 = vpop.f32.mrf.mxu0
        %v258 = vadd.f32 0.0, %v257
        %v259 = vpop.f32.mrf.mxu0
        %v260 = vpop.f32.mrf.mxu0
        %261 = vdwg.mxu0
        %262 = vmatprep.subr.bf16.mxu0 0
        %263 = vmatpush1.bf16.msra.mxu0 0
        %264 = vmatprep.subr.bf16.mxu0 0
        %265 = vmatpush1.bf16.msra.mxu0 0
        %266 = vmatprep.subr.bf16.mxu0 0
        %267 = vmatpush1.bf16.msra.mxu0 0
        %268 = vmatprep.subr.bf16.mxu0 0
        %269 = vmatpush1.bf16.msra.mxu0 0
        %270 = vmatprep.subr.bf16.mxu0 0
        %271 = vmatpush1.bf16.msra.mxu0 0
        %272 = vmatprep.subr.bf16.mxu0 0
        %273 = vmatpush1.bf16.msra.mxu0 0
        %274 = vmatprep.subr.bf16.mxu0 0
        %275 = vmatpush1.bf16.msra.mxu0 %v210
        %276 = vmatprep.subr.bf16.mxu0 0
        %277 = vmatpush1.bf16.msra.mxu0 %v207
        %278 = vmatprep.subr.bf16.mxu0 0
        %279 = vmatpush2.bf16.msra.mxu0 0
        %280 = vmatprep.subr.bf16.mxu0 0
        %281 = vmatpush2.bf16.msra.mxu0 0
        %282 = vmatprep.subr.bf16.mxu0 0
        %283 = vmatpush2.bf16.msra.mxu0 0
        %284 = vmatprep.subr.bf16.mxu0 0
        %285 = vmatpush2.bf16.msra.mxu0 0
        %286 = vmatprep.subr.bf16.mxu0 0
        %287 = vmatpush2.bf16.msra.mxu0 0
        %288 = vmatprep.subr.bf16.mxu0 0
        %289 = vmatpush2.bf16.msra.mxu0 0
        %290 = vmatprep.subr.bf16.mxu0 0
        %291 = vmatpush2.bf16.msra.mxu0 0
        %292 = vmatprep.subr.bf16.mxu0 0
        %293 = vmatpush2.bf16.msra.mxu0 0
        %294 = vmatprep.mubr.bf16.mxu0 0
        %295 = vmatmul.mubr.bf16.gmra.mxu0 %v219
        %v296 = vpop.f32.mrf.mxu0
        %v297 = vadd.f32 0.0, %v296
        %v298 = vpop.f32.mrf.mxu0
        %v299 = vpop.f32.mrf.mxu0
        %v300 = vpop.f32.mrf.mxu0
        %301 = vdwg.mxu0
        %v302 = vpack.c.bf16 %v256, %v256
        %v303 = vpack.c.bf16 %v258, %v258
        %v304 = vpack.c.bf16 %v297, %v297
        %v308 = vunpack.c.l.b16 %v302
        %v309 = vunpack.c.l.b16 %v303
        %v310 = vunpack.c.l.b16 %v304
        %v311 = vpack.c.b16 %v309, %v308
        %v312 = vpack.c.b16 %v310, %v310
        %315 = vst [vmem:[#allocation2] sm:$0xff] %v311
        %316 = vst [vmem:[#allocation2 + $0x8] sm:$0xf] %v312
        %v317 = vld [vmem:[#allocation2] sm:$0xf]
        %v318 = vld [vmem:[#allocation2 + $0x4] sm:$0xf]
        %v319 = vld [vmem:[#allocation2 + $0x8] sm:$0xf]
        %320 = vmatprep.subr.bf16.mxu0 0
        %321 = vmatpush1.bf16.xpose.msra.mxu0 0
        %322 = vmatprep.subr.bf16.mxu0 0
        %323 = vmatpush1.bf16.xpose.msra.mxu0 0
        %324 = vmatprep.subr.bf16.mxu0 0
        %325 = vmatpush1.bf16.xpose.msra.mxu0 0
        %326 = vmatprep.subr.bf16.mxu0 0
        %327 = vmatpush1.bf16.xpose.msra.mxu0 0
        %328 = vmatprep.subr.bf16.mxu0 0
        %329 = vmatpush1.bf16.xpose.msra.mxu0 0
        %330 = vmatprep.subr.bf16.mxu0 0
        %331 = vmatpush1.bf16.xpose.msra.mxu0 0
        %332 = vmatprep.subr.bf16.mxu0 0
        %333 = vmatpush1.bf16.xpose.msra.mxu0 0
        %334 = vmatprep.subr.bf16.mxu0 0
        %335 = vmatpush1.bf16.xpose.msra.mxu0 %v318
        %336 = vmatprep.subr.bf16.mxu0 0
        %337 = vmatpush2.bf16.xpose.msra.mxu0 0
        %338 = vmatprep.subr.bf16.mxu0 0
        %339 = vmatpush2.bf16.xpose.msra.mxu0 0
        %340 = vmatprep.subr.bf16.mxu0 0
        %341 = vmatpush2.bf16.xpose.msra.mxu0 0
        %342 = vmatprep.subr.bf16.mxu0 0
        %343 = vmatpush2.bf16.xpose.msra.mxu0 0
        %344 = vmatprep.subr.bf16.mxu0 0
        %345 = vmatpush2.bf16.xpose.msra.mxu0 0
        %346 = vmatprep.subr.bf16.mxu0 0
        %347 = vmatpush2.bf16.xpose.msra.mxu0 0
        %348 = vmatprep.subr.bf16.mxu0 0
        %349 = vmatpush2.bf16.xpose.msra.mxu0 0
        %350 = vmatprep.subr.bf16.mxu0 0
        %351 = vmatpush2.bf16.xpose.msra.mxu0 0
        %352 = vmatprep.mubr.bf16.mxu0 0
        %353 = vmatmul.mubr.bf16.gmra.mxu0 %v317
        %v354 = vpop.f32.mrf.mxu0
        %v355 = vadd.f32 0.0, %v354
        %v356 = vpop.f32.mrf.mxu0
        %v357 = vpop.f32.mrf.mxu0
        %v358 = vpop.f32.mrf.mxu0
        %359 = vdwg.mxu0
        %vm360 = vcmask 64512
        %v361 = vsel %vm360, %v355, -inf
        %362 = vmax.xlane.f32.xlu0 %v361
        %v363 = vpop.xlane.xlu0 %362
        %v364 = vsub.f32 %v355, %v363
        %v365 = vmul.f32 %v364, 1.442695
        %v366 = vpow.pop %v365
        %v367 = vsel %vm360, %v366, 0.0
        %368 = vadd.xlane.f32.xlu0 %v367
        %v369 = vpop.xlane.xlu0 %368
        %v370 = vrcp.pop %v369
        %v371 = vmul.f32 %v366, %v370
        %v372 = vpack.c.bf16 %v371, %v371
        %v374 = vsel %vm360, %v372, 0
        %vm376 = vcmask 1043456
        %v378 = vsel %vm376, %v319, 0
        %380 = vmatprep.subr.bf16.mxu0 0
        %381 = vmatpush1.bf16.msra.mxu0 0
        %382 = vmatprep.subr.bf16.mxu0 0
        %383 = vmatpush1.bf16.msra.mxu0 0
        %384 = vmatprep.subr.bf16.mxu0 0
        %385 = vmatpush1.bf16.msra.mxu0 0
        %386 = vmatprep.subr.bf16.mxu0 0
        %387 = vmatpush1.bf16.msra.mxu0 0
        %388 = vmatprep.subr.bf16.mxu0 0
        %389 = vmatpush1.bf16.msra.mxu0 0
        %390 = vmatprep.subr.bf16.mxu0 0
        %391 = vmatpush1.bf16.msra.mxu0 0
        %392 = vmatprep.subr.bf16.mxu0 0
        %393 = vmatpush1.bf16.msra.mxu0 0
        %394 = vmatprep.subr.bf16.mxu0 0
        %395 = vmatpush1.bf16.msra.mxu0 %v378
        %396 = vmatprep.subr.bf16.mxu0 0
        %397 = vmatpush2.bf16.msra.mxu0 0
        %398 = vmatprep.subr.bf16.mxu0 0
        %399 = vmatpush2.bf16.msra.mxu0 0
        %400 = vmatprep.subr.bf16.mxu0 0
        %401 = vmatpush2.bf16.msra.mxu0 0
        %402 = vmatprep.subr.bf16.mxu0 0
        %403 = vmatpush2.bf16.msra.mxu0 0
        %404 = vmatprep.subr.bf16.mxu0 0
        %405 = vmatpush2.bf16.msra.mxu0 0
        %406 = vmatprep.subr.bf16.mxu0 0
        %407 = vmatpush2.bf16.msra.mxu0 0
        %408 = vmatprep.subr.bf16.mxu0 0
        %409 = vmatpush2.bf16.msra.mxu0 0
        %410 = vmatprep.subr.bf16.mxu0 0
        %411 = vmatpush2.bf16.msra.mxu0 0
        %412 = vmatprep.mubr.bf16.mxu0 0
        %413 = vmatmul.mubr.bf16.gmra.mxu0 %v374
        %v414 = vpop.f32.mrf.mxu0
        %v415 = vadd.f32 0.0, %v414
        %v416 = vpop.f32.mrf.mxu0
        %v417 = vpop.f32.mrf.mxu0
        %v418 = vpop.f32.mrf.mxu0
        %419 = vdwg.mxu0
        %v420 = vpack.c.bf16 %v415, %v415
        %421 = vst [vmem:[%s173] sm:$0xf] %v420
        %s422 = sand.u32 %s75, 1
        %s423 = scalar_lea.sflag [#allocation5], %s422
        %s424 = sand.u32 %s75, 1
        %s425 = smul.addr %s424, 4
        %s426 = scalar_lea.vmem [#allocation8], %s425
        // Predicated region
        $region37: #{tpu_custom_call.1} parent=27 // pred_check
          %p427 = pneg %p85
        $region38: #{tpu_custom_call.1} parent=27 // pred_check_branch
          %429 = sbr.rel (%p427) target = $region40
        $region39: #{tpu_custom_call.1} parent=27 // pred_region
          %s431 = ssub.s32 64, 64
          %432 = vsyncadd %s423, %s431
          %s433 = smul.addr %s20, 64
          %s434 = scalar_lea.hbm %s2, %s433
          %s436 = sshll.u32 %s426, 4
          %s437 = int_to_ptr.vmem [resolvable:$true] %s436
          %439 = dma.vmem_to_hbm [thread:$0]  %s437, 64, %s434, %s423
        $region40: #{tpu_custom_call.1} parent=27 // pred_fallthru
          _
      $region28: #{tpu_custom_call.1} parent=5 // pred_fallthru
        _
      %p440 = scmp.le.s32.totalorder 2, %s15
      // Predicated region
      $region41: #{tpu_custom_call.1} parent=5 // pred_check
        %p441 = pneg %p440
      $region42: #{tpu_custom_call.1} parent=5 // pred_check_branch
        %443 = sbr.rel (%p441) target = $region44
      $region43: #{tpu_custom_call.1} parent=5 // pred_region
        %s444 = ssub.s32 %s15, 2
        // Predicated region
        $region45: #{tpu_custom_call.1} parent=43 // pred_check
          %p445 = pneg %p91
        $region46: #{tpu_custom_call.1} parent=43 // pred_check_branch
          %447 = sbr.rel (%p445) target = $region48
        $region47: #{tpu_custom_call.1} parent=43 // pred_region
          %s448 = sand.u32 %s76, 1
          %s449 = scalar_lea.sflag [#allocation5], %s448
          %s450 = sand.u32 %s76, 1
          %s451 = smul.addr %s450, 4
          %s452 = scalar_lea.vmem [#allocation8], %s451
          %453 = dma.done %s449, 64
        $region48: #{tpu_custom_call.1} parent=43 // pred_fallthru
          _
      $region44: #{tpu_custom_call.1} parent=5 // pred_fallthru
        _
    $region6: #{tpu_custom_call.1} parent=1 // loop_footer
      %s19 = sadd.s32 1, %s15
    $region7: #{tpu_custom_call.1} parent=1 // loop_footer_branch
      %14 = sbr.rel target = $region3
    $region8: #{tpu_custom_call.1} parent=1 // loop_exit
      _
    %454 = vsyncpa [#allocation4], 1
    %s455 = scalar_lea.sflag [#allocation4], 1
    %456 = vsyncpa %s455, 1
    %457 = vsyncpa [#allocation7], 1
    %458 = vsyncpa [#allocation5], 1
    %s459 = scalar_lea.sflag [#allocation5], 1
    %460 = vsyncpa %s459, 1

</llo_original>
